<compile_context>
chip_gen: v7x
topology: tpu7x:2x2x1
jax: 0.10.0
libtpu: 0.0.40
codegen_flags: <defaults>
</compile_context>

<pallas_src>
import math
import jax
import jax.numpy as jnp
import numpy as np
from jax.experimental import pallas as pl
from jax.experimental.pallas import tpu as pltpu

# ----------------------------- configuration --------------------------------
N_QUBITS = 4
LAYERS = 3
BATCH = 8
DIM = 2 ** N_QUBITS          # 16
BD = BATCH * DIM             # 128 -> one lane register for the batched state
TWO_BD = 2 * BD              # 256 -> [real half | imag half]
OUT_LANES = 128              # lane-dense output row (first BATCH entries valid)
DATA_REUPLOADING = True

# Static tables (plain numpy, baked at trace time).
# wire 0 = most-significant bit (PennyLane convention)
_BITS = ((np.arange(DIM)[:, None] >> np.arange(N_QUBITS - 1, -1, -1)[None, :]) & 1).astype(np.int32)


def _cz_ring_diag():
    phase = np.ones(DIM, np.float32)
    pairs = ([(q, (q + 1) % N_QUBITS) for q in range(N_QUBITS)]
             if N_QUBITS > 2 else [(0, 1)])
    for a, b in pairs:
        phase *= np.where((_BITS[:, a] & _BITS[:, b]) == 1, -1.0, 1.0).astype(np.float32)
    return phase


_CZ_DIAG = _cz_ring_diag()

# Lane -> sample scatter matrix: per-sample reduction of the quadratic form is done
# with one lane-dense MXU matmul instead of a masked cross-lane reduce.
_G = np.zeros((TWO_BD, OUT_LANES), np.float32)
_ROWS = np.arange(TWO_BD)
_G[_ROWS, (_ROWS // DIM) % BATCH] = 1.0


# ------------------------- unitary construction (glue, XLA) ------------------
def build_unitaries(x, input_scaling, variational, data_reuploading):
    """Vectorized construction (no python kron chains of tiny 2x2 ops)."""
    # angles[l, b, q] = input_scaling[l, q] * x[b, q]
    angles = input_scaling[:, None, :] * x[None, :, :]                 # (L, B, Q)
    if not data_reuploading:
        mask = (jnp.arange(LAYERS) == 0).astype(x.dtype)[:, None, None]
        angles = angles * mask                                          # RX(0) == I for l > 0

    bits = jnp.asarray(_BITS)                                           # (D, Q)
    eq = bits[:, None, :] == bits[None, :, :]                           # (D, D, Q)

    # RX encoding:  E[l,b,i,j] = prod_q RX(theta_lbq)[bit_q(i), bit_q(j)]
    c = jnp.cos(angles / 2).astype(jnp.complex64)
    s = (-1j * jnp.sin(angles / 2)).astype(jnp.complex64)
    fac = jnp.where(eq[None, None], c[:, :, None, None, :], s[:, :, None, None, :])
    enc = jnp.prod(fac, axis=-1)                                        # (L, B, D, D)

    # Variational: per-qubit G = RZ(wz) @ RY(wy); kron over qubits; CZ ring phases.
    wy = variational[:, :N_QUBITS]                                      # (L, Q)
    wz = variational[:, N_QUBITS:]
    ca, sa = jnp.cos(wy / 2), jnp.sin(wy / 2)
    em, ep = jnp.exp(-0.5j * wz), jnp.exp(0.5j * wz)
    g00, g01 = em * ca, -em * sa
    g10, g11 = ep * sa, ep * ca
    gmat = jnp.stack([jnp.stack([g00, g01], -1),
                      jnp.stack([g10, g11], -1)], -2)                   # (L, Q, 2, 2)
    qidx = jnp.arange(N_QUBITS)[None, None, :]
    sel = gmat[:, qidx, bits[:, None, :], bits[None, :, :]]             # (L, D, D, Q)
    vsq = jnp.prod(sel, axis=-1)                                        # (L, D, D)
    var = jnp.asarray(_CZ_DIAG).astype(jnp.complex64)[None, :, None] * vsq
    return enc, var


# ------------------------------- Pallas kernel -------------------------------
def qnn_kernel(t_ref, w_ref, d_ref, g_ref, out_ref):
    # State t = [psi_r | psi_i] lane-packed over (sample, amplitude): shape (1, 2*B*D).
    # t already holds the post-layer-1 state (computed analytically in the wrapper);
    # one lane-dense (1,256)@(256,256) MXU matmul propagates the whole batch through
    # the precomposed layers-2..L unitary (block-diag over batch + real embedding).
    t = jnp.dot(t_ref[...], w_ref[...], preferred_element_type=jnp.float32)

    # expval of the real diagonal projector P (true for |0..0><0..0|):
    #   e_b = sum_i P_ii * (psi_r[b,i]^2 + psi_i[b,i]^2)
    # VPU lane-diagonal multiply replaces the old blockdiag(P) matmul; the per-sample
    # reduction is one lane-dense (1,256)@(256,128) matmul with the scatter matrix G.
    out_ref[...] = jnp.dot(t * t * d_ref[...], g_ref[...],
                           preferred_element_type=jnp.float32)


@jax.jit
def qnn_forward(x, input_scaling, variational, projector):
    enc, var = build_unitaries(x, input_scaling, variational, DATA_REUPLOADING)

    # Fuse encoding + variational into one per-layer per-sample unitary.
    u = jnp.einsum('lij,lbjk->lbik', var, enc)                          # (L, B, D, D) complex

    # Layer 1 applied analytically: U_1,b |0> = first column of U_1,b.
    psi1 = u[0, :, :, 0]                                                # (B, D) complex

    # Precompose layers 2..L per sample (tiny complex matmuls stay in the wrapper).
    if LAYERS > 1:
        m = u[1]
        for l in range(2, LAYERS):
            m = jnp.einsum('bij,bjk->bik', u[l], m)                     # (B, D, D)
    else:
        m = jnp.broadcast_to(jnp.eye(DIM, dtype=u.dtype), (BATCH, DIM, DIM))

    # Row-vector propagation psi_row' = psi_row @ M^T with the real embedding
    # [[Ar, Ai], [-Ai, Ar]]; block-diagonal over the batch -> one (256,256) weight.
    a = jnp.swapaxes(m, -1, -2)
    ar = jnp.real(a).astype(jnp.float32)
    ai = jnp.imag(a).astype(jnp.float32)
    eyeb = jnp.eye(BATCH, dtype=jnp.float32)

    def _blockdiag(blk):                                                # (B,D,D) -> (BD,BD)
        return (blk[:, :, None, :] * eyeb[:, None, :, None]).reshape(BD, BD)

    br, bi = _blockdiag(ar), _blockdiag(ai)
    w = jnp.concatenate([jnp.concatenate([br, bi], axis=-1),
                         jnp.concatenate([-bi, br], axis=-1)], axis=-2)  # (256, 256)

    # Initial (post-layer-1) state, lane-packed [Re | Im].
    t1 = jnp.concatenate([jnp.real(psi1).reshape(1, BD),
                          jnp.imag(psi1).reshape(1, BD)],
                         axis=-1).astype(jnp.float32)                    # (1, 256)

    # Projector as a lane-diagonal weight (valid for the module's |0><0| projector).
    # TODO(synk): a general Hermitian observable with off-diagonal / complex entries would
    # need the generic blockdiag(P) matmul path; the module always builds real diagonal P.
    d = jnp.diagonal(projector).astype(jnp.float32)                     # (D,)
    pdiag = jnp.tile(d, 2 * BATCH).reshape(1, TWO_BD)                   # (1, 256)

    g = jnp.asarray(_G)                                                  # (256, 128) constant

    # Single invocation, no grid: ~0.39 MB of untiled VMEM inputs, 2 serial MXU matmuls.
    out = pl.pallas_call(
        qnn_kernel,
        out_shape=jax.ShapeDtypeStruct((1, OUT_LANES), jnp.float32),
        in_specs=[pl.BlockSpec(memory_space=pltpu.MemorySpace.VMEM)] * 4,
        out_specs=pl.BlockSpec(memory_space=pltpu.MemorySpace.VMEM),
    )(t1, w, pdiag, g)
    return out[0, :BATCH]  # (batch,), matches qml.expval(qml.Hermitian(projector))


# --------------------------- pure-JAX reference ------------------------------
def qnn_reference(x, input_scaling, variational, projector):
    enc, var = build_unitaries(x, input_scaling, variational, DATA_REUPLOADING)
    b = x.shape[0]
    psi = jnp.zeros((b, DIM), jnp.complex64).at[:, 0].set(1.0)
    for l in range(LAYERS):
        psi = jnp.einsum('bij,bj->bi', enc[l], psi)
        psi = jnp.einsum('ij,bj->bi', var[l], psi)
    p = projector.astype(jnp.complex64)
    return jnp.einsum('bi,ij,bj->b', jnp.conj(psi), p, psi).real


# ----------------------------------- main ------------------------------------
if __name__ == "__main__":
    key = jax.random.PRNGKey(0)
    kx, kv = jax.random.split(key)

    x = jax.random.uniform(kx, (BATCH, N_QUBITS), jnp.float32, 0.0, math.pi)
    # Deterministic parameter init mirroring QNN.__init__ ('he' ansatz):
    input_scaling = jnp.ones((LAYERS, N_QUBITS), jnp.float32)
    variational = jax.random.uniform(kv, (LAYERS, 2 * N_QUBITS), jnp.float32,
                                     -math.pi, math.pi)
    projector = jnp.zeros((DIM, DIM), jnp.float32).at[0, 0].set(1.0)

    out = qnn_forward(x, input_scaling, variational, projector)
    out = jax.block_until_ready(out)

    ref = qnn_reference(x, input_scaling, variational, projector)
    assert out.shape == (BATCH,)
    np.testing.assert_allclose(np.asarray(out), np.asarray(ref), rtol=1e-4, atol=1e-5)
    print("KERNEL_OK")
</pallas_src>

<mosaic_0001>
module attributes {stable_mosaic.version = 11 : i64} {
  func.func @qnn_kernel(%arg0: memref<1x256xf32, #tpu.memory_space<vmem>>, %arg1: memref<256x256xf32, #tpu.memory_space<vmem>>, %arg2: memref<1x256xf32, #tpu.memory_space<vmem>>, %arg3: memref<256x128xf32, #tpu.memory_space<vmem>>, %arg4: memref<1x128xf32, #tpu.memory_space<vmem>>) attributes {dimension_semantics = [], scalar_prefetch = 0 : i64, scratch_operands = 0 : i64, tpu.core_type = #tpu.core_type<tc>} {
    %c0 = arith.constant 0 : index
    %c0_0 = arith.constant 0 : index
    %0 = vector.load %arg0[%c0, %c0_0] : memref<1x256xf32, #tpu.memory_space<vmem>>, vector<1x256xf32>
    %c0_1 = arith.constant 0 : index
    %c0_2 = arith.constant 0 : index
    %1 = vector.load %arg1[%c0_1, %c0_2] : memref<256x256xf32, #tpu.memory_space<vmem>>, vector<256x256xf32>
    %cst = arith.constant dense<0.000000e+00> : vector<1x256xf32>
    %2 = tpu.matmul %0, %1, %cst {dimension_numbers = #tpu.dot_dimension_numbers<[1], [0], [0], [1], [0, 0, 1, 1], [], []>} : vector<1x256xf32>, vector<256x256xf32>, vector<1x256xf32> -> vector<1x256xf32>
    %3 = arith.mulf %2, %2 : vector<1x256xf32>
    %c0_3 = arith.constant 0 : index
    %c0_4 = arith.constant 0 : index
    %4 = vector.load %arg2[%c0_3, %c0_4] : memref<1x256xf32, #tpu.memory_space<vmem>>, vector<1x256xf32>
    %5 = arith.mulf %3, %4 : vector<1x256xf32>
    %c0_5 = arith.constant 0 : index
    %c0_6 = arith.constant 0 : index
    %6 = vector.load %arg3[%c0_5, %c0_6] : memref<256x128xf32, #tpu.memory_space<vmem>>, vector<256x128xf32>
    %cst_7 = arith.constant dense<0.000000e+00> : vector<1x128xf32>
    %7 = tpu.matmul %5, %6, %cst_7 {dimension_numbers = #tpu.dot_dimension_numbers<[1], [0], [0], [1], [0, 0, 1, 1], [], []>} : vector<1x256xf32>, vector<256x128xf32>, vector<1x128xf32> -> vector<1x128xf32>
    %c0_8 = arith.constant 0 : index
    %c0_9 = arith.constant 0 : index
    %8 = vector.load %arg4[%c0_8, %c0_9] : memref<1x128xf32, #tpu.memory_space<vmem>>, vector<1x128xf32>
    tpu.vector_store %arg4[%c0_8, %c0_9], %7 {strides = array<i32>} : memref<1x128xf32, #tpu.memory_space<vmem>>, vector<1x128xf32>,
    return
  }
}

</mosaic_0001>

<llo_original>
// kernel: neg.3
$region0: #{neg.3}
  #allocation0 [shape = 's32[1]{0}', space=sflag, size = 0x4, scoped, tag = 'scoped memory for neg.3']
  %s0 = inlined_call_operand.vmem [shape: f32[128,128], index: 0, kind: input, shape index: {}]
  %s1 = inlined_call_operand.vmem [shape: f32[128,128], index: 1, kind: output, shape index: {}]
  %v2 = vld [vmem:[%s0] sm:$0xff]
  %3 = xla_tuple %v2
  %4 = xla_tuple %3
  %v5 = vxor.u32 %v2, 2147483648
  %6 = xla_tuple %v5
  %7 = vst [vmem:[%s1] sm:$0xff] %v5
  %s8 = scalar_lea.vmem %s0, 8
  %v9 = vld [vmem:[%s8] sm:$0xff]
  %10 = xla_tuple %v9
  %11 = xla_tuple %10
  %v12 = vxor.u32 %v9, 2147483648
  %13 = xla_tuple %v12
  %s14 = scalar_lea.vmem %s1, 8
  %15 = vst [vmem:[%s14] sm:$0xff] %v12
  %s16 = scalar_lea.vmem %s0, 16
  %v17 = vld [vmem:[%s16] sm:$0xff]
  %18 = xla_tuple %v17
  %19 = xla_tuple %18
  %v20 = vxor.u32 %v17, 2147483648
  %21 = xla_tuple %v20
  %s22 = scalar_lea.vmem %s1, 16
  %23 = vst [vmem:[%s22] sm:$0xff] %v20
  %s24 = scalar_lea.vmem %s0, 24
  %v25 = vld [vmem:[%s24] sm:$0xff]
  %26 = xla_tuple %v25
  %27 = xla_tuple %26
  %v28 = vxor.u32 %v25, 2147483648
  %29 = xla_tuple %v28
  %s30 = scalar_lea.vmem %s1, 24
  %31 = vst [vmem:[%s30] sm:$0xff] %v28
  %s32 = scalar_lea.vmem %s0, 32
  %v33 = vld [vmem:[%s32] sm:$0xff]
  %34 = xla_tuple %v33
  %35 = xla_tuple %34
  %v36 = vxor.u32 %v33, 2147483648
  %37 = xla_tuple %v36
  %s38 = scalar_lea.vmem %s1, 32
  %39 = vst [vmem:[%s38] sm:$0xff] %v36
  %s40 = scalar_lea.vmem %s0, 40
  %v41 = vld [vmem:[%s40] sm:$0xff]
  %42 = xla_tuple %v41
  %43 = xla_tuple %42
  %v44 = vxor.u32 %v41, 2147483648
  %45 = xla_tuple %v44
  %s46 = scalar_lea.vmem %s1, 40
  %47 = vst [vmem:[%s46] sm:$0xff] %v44
  %s48 = scalar_lea.vmem %s0, 48
  %v49 = vld [vmem:[%s48] sm:$0xff]
  %50 = xla_tuple %v49
  %51 = xla_tuple %50
  %v52 = vxor.u32 %v49, 2147483648
  %53 = xla_tuple %v52
  %s54 = scalar_lea.vmem %s1, 48
  %55 = vst [vmem:[%s54] sm:$0xff] %v52
  %s56 = scalar_lea.vmem %s0, 56
  %v57 = vld [vmem:[%s56] sm:$0xff]
  %58 = xla_tuple %v57
  %59 = xla_tuple %58
  %v60 = vxor.u32 %v57, 2147483648
  %61 = xla_tuple %v60
  %s62 = scalar_lea.vmem %s1, 56
  %63 = vst [vmem:[%s62] sm:$0xff] %v60
  %s64 = scalar_lea.vmem %s0, 64
  %v65 = vld [vmem:[%s64] sm:$0xff]
  %66 = xla_tuple %v65
  %67 = xla_tuple %66
  %v68 = vxor.u32 %v65, 2147483648
  %69 = xla_tuple %v68
  %s70 = scalar_lea.vmem %s1, 64
  %71 = vst [vmem:[%s70] sm:$0xff] %v68
  %s72 = scalar_lea.vmem %s0, 72
  %v73 = vld [vmem:[%s72] sm:$0xff]
  %74 = xla_tuple %v73
  %75 = xla_tuple %74
  %v76 = vxor.u32 %v73, 2147483648
  %77 = xla_tuple %v76
  %s78 = scalar_lea.vmem %s1, 72
  %79 = vst [vmem:[%s78] sm:$0xff] %v76
  %s80 = scalar_lea.vmem %s0, 80
  %v81 = vld [vmem:[%s80] sm:$0xff]
  %82 = xla_tuple %v81
  %83 = xla_tuple %82
  %v84 = vxor.u32 %v81, 2147483648
  %85 = xla_tuple %v84
  %s86 = scalar_lea.vmem %s1, 80
  %87 = vst [vmem:[%s86] sm:$0xff] %v84
  %s88 = scalar_lea.vmem %s0, 88
  %v89 = vld [vmem:[%s88] sm:$0xff]
  %90 = xla_tuple %v89
  %91 = xla_tuple %90
  %v92 = vxor.u32 %v89, 2147483648
  %93 = xla_tuple %v92
  %s94 = scalar_lea.vmem %s1, 88
  %95 = vst [vmem:[%s94] sm:$0xff] %v92
  %s96 = scalar_lea.vmem %s0, 96
  %v97 = vld [vmem:[%s96] sm:$0xff]
  %98 = xla_tuple %v97
  %99 = xla_tuple %98
  %v100 = vxor.u32 %v97, 2147483648
  %101 = xla_tuple %v100
  %s102 = scalar_lea.vmem %s1, 96
  %103 = vst [vmem:[%s102] sm:$0xff] %v100
  %s104 = scalar_lea.vmem %s0, 104
  %v105 = vld [vmem:[%s104] sm:$0xff]
  %106 = xla_tuple %v105
  %107 = xla_tuple %106
  %v108 = vxor.u32 %v105, 2147483648
  %109 = xla_tuple %v108
  %s110 = scalar_lea.vmem %s1, 104
  %111 = vst [vmem:[%s110] sm:$0xff] %v108
  %s112 = scalar_lea.vmem %s0, 112
  %v113 = vld [vmem:[%s112] sm:$0xff]
  %114 = xla_tuple %v113
  %115 = xla_tuple %114
  %v116 = vxor.u32 %v113, 2147483648
  %117 = xla_tuple %v116
  %s118 = scalar_lea.vmem %s1, 112
  %119 = vst [vmem:[%s118] sm:$0xff] %v116
  %s120 = scalar_lea.vmem %s0, 120
  %v121 = vld [vmem:[%s120] sm:$0xff]
  %122 = xla_tuple %v121
  %123 = xla_tuple %122
  %v124 = vxor.u32 %v121, 2147483648
  %125 = xla_tuple %v124
  %s126 = scalar_lea.vmem %s1, 120
  %127 = vst [vmem:[%s126] sm:$0xff] %v124

// kernel: tile.8
$region0: #{tile.8}
  #allocation0 [shape = 's32[1]{0}', space=sflag, size = 0x4, scoped, tag = 'scoped memory for tile.8']
  %s0 = inlined_call_operand.vmem [shape: f32[16], index: 0, kind: input, shape index: {}]
  %s1 = inlined_call_operand.vmem [shape: f32[16,16], index: 1, kind: output, shape index: {}]
  // Predicated region
  $region2: #{tile.8} parent=0 // pred_check
    _
  $region3: #{tile.8} parent=0 // pred_check_branch
    %3 = sbr.rel (0) target = $region5
  $region4: #{tile.8} parent=0 // pred_region
    _
  $region5: #{tile.8} parent=0 // pred_fallthru
    _
  %v4 = vld [vmem:[%s0] ss:$0 sm:$0xff]
  %5 = vst [vmem:[%s1] sm:$0xff] %v4
  %s6 = scalar_lea.vmem %s1, 8
  %7 = vst [vmem:[%s6] sm:$0xff] %v4

// kernel: tile.9
$region0: #{tile.9}
  %s0 = inlined_call_operand.vmem [shape: f32[16,16], index: 0, kind: input, shape index: {}]
  %s1 = inlined_call_operand.vmem [shape: f32[1,256], index: 1, kind: output, shape index: {}]
  $region1: #{tile.9} parent=0
    #allocation0 [shape = 'u8[8192]{0}', space=vmem, size = 0x2000, scoped, tag = 'scoped mem for output reshape']
    %s2 = smov 3
    %v3 = vld [vmem:[%s0] ss:$8 sm:%s2]
    %vm4 = vcmask 130048
    %5 = vst.msk [vmem:[#allocation0] ss:$8 sm:$0x3] %vm4, %v3
    %s6 = scalar_lea.vmem %s0, 7
    %s7 = smov 3
    %v8 = vld [vmem:[%s6] ss:$8 sm:%s7]
    %9 = vrot.lane.b32.xlu0 %v8, 112
    %v10 = vpop.permute.xlu0 %9
    %vm11 = vcmask 1048448
    %12 = vst.msk [vmem:[#allocation0] ss:$8 sm:$0x3] %vm11, %v10
    %s13 = scalar_lea.vmem %s0, 6
    %s14 = smov 3
    %v15 = vld [vmem:[%s13] ss:$8 sm:%s14]
    %16 = vrot.lane.b32.xlu0 %v15, 96
    %v17 = vpop.permute.xlu0 %16
    %vm18 = vcmask 917248
    %19 = vst.msk [vmem:[#allocation0] ss:$8 sm:$0x3] %vm18, %v17
    %s20 = scalar_lea.vmem %s0, 5
    %s21 = smov 3
    %v22 = vld [vmem:[%s20] ss:$8 sm:%s21]
    %23 = vrot.lane.b32.xlu0 %v22, 80
    %v24 = vpop.permute.xlu0 %23
    %vm25 = vcmask 786048
    %26 = vst.msk [vmem:[#allocation0] ss:$8 sm:$0x3] %vm25, %v24
    %s27 = scalar_lea.vmem %s0, 4
    %s28 = smov 3
    %v29 = vld [vmem:[%s27] ss:$8 sm:%s28]
    %30 = vrot.lane.b32.xlu0 %v29, 64
    %v31 = vpop.permute.xlu0 %30
    %vm32 = vcmask 654848
    %33 = vst.msk [vmem:[#allocation0] ss:$8 sm:$0x3] %vm32, %v31
    %s34 = scalar_lea.vmem %s0, 3
    %s35 = smov 3
    %v36 = vld [vmem:[%s34] ss:$8 sm:%s35]
    %37 = vrot.lane.b32.xlu0 %v36, 48
    %v38 = vpop.permute.xlu0 %37
    %vm39 = vcmask 523648
    %40 = vst.msk [vmem:[#allocation0] ss:$8 sm:$0x3] %vm39, %v38
    %s41 = scalar_lea.vmem %s0, 2
    %s42 = smov 3
    %v43 = vld [vmem:[%s41] ss:$8 sm:%s42]
    %44 = vrot.lane.b32.xlu0 %v43, 32
    %v45 = vpop.permute.xlu0 %44
    %vm46 = vcmask 392448
    %47 = vst.msk [vmem:[#allocation0] ss:$8 sm:$0x3] %vm46, %v45
    %s48 = scalar_lea.vmem %s0, 1
    %s49 = smov 3
    %v50 = vld [vmem:[%s48] ss:$8 sm:%s49]
    %51 = vrot.lane.b32.xlu0 %v50, 16
    %v52 = vpop.permute.xlu0 %51
    %vm53 = vcmask 261248
    %54 = vst.msk [vmem:[#allocation0] ss:$8 sm:$0x3] %vm53, %v52
    %s56 = sshllo.u32 0, 1
    %v58 = vld [vmem:[#allocation0] sm:%s56]
    %s59 = sshllo.u32 0, 1
    %60 = vst [vmem:[%s1] sm:%s59] %v58
    %s61 = scalar_lea.vmem [#allocation0], 8
    %v62 = vld [vmem:[%s61] sm:%s56]
    %s63 = sshllo.u32 0, 1
    %s64 = scalar_lea.vmem %s1, 1
    %65 = vst [vmem:[%s64] sm:%s63] %v62

// kernel: qnn_forward.1
$region0: #{qnn_forward.1}
  #allocation0 [shape = 'u32[]', space=smem, size = 0x4, offset = 0x4, fixed_abs, tag = 'smem constant byte address 0x4 - core index']
  #allocation1 [shape = 'u32[144,128]{1,0:T(1,128)}', space=vmem, size = 0x12000, scoped, tag = 'internal scratch']
  %s0 = inlined_call_operand.vmem [shape: f32[1,256], index: 0, kind: input, shape index: {}]
  %s1 = inlined_call_operand.vmem [shape: f32[256,256], index: 1, kind: input, shape index: {}]
  %s2 = inlined_call_operand.vmem [shape: f32[1,256], index: 2, kind: input, shape index: {}]
  %s3 = inlined_call_operand.vmem [shape: f32[256,128], index: 3, kind: input, shape index: {}]
  %s4 = inlined_call_operand.vmem [shape: f32[1,128], index: 4, kind: output, shape index: {}]
  %s5 = sld [smem:[#allocation0]]
  $region26: #{qnn_forward.1} parent=0
    _
  %s7 = ssub.s32 1, %s5
  %s8 = scalar_select 0, %s7, %s5
  // Predicated region
  $region2: #{qnn_forward.1} parent=0 // pred_check
    _
  $region3: #{qnn_forward.1} parent=0 // pred_check_branch
    %10 = sbr.rel (0) target = $region5
  $region4: #{qnn_forward.1} parent=0 // pred_region
    _
  $region5: #{qnn_forward.1} parent=0 // pred_fallthru
    _
  // Predicated region
  $region6: #{qnn_forward.1} parent=0 // pred_check
    _
  $region7: #{qnn_forward.1} parent=0 // pred_check_branch
    %12 = sbr.rel (0) target = $region9
  $region8: #{qnn_forward.1} parent=0 // pred_region
    _
  $region9: #{qnn_forward.1} parent=0 // pred_fallthru
    _
  // Predicated region
  $region10: #{qnn_forward.1} parent=0 // pred_check
    _
  $region11: #{qnn_forward.1} parent=0 // pred_check_branch
    %14 = sbr.rel (0) target = $region13
  $region12: #{qnn_forward.1} parent=0 // pred_region
    _
  $region13: #{qnn_forward.1} parent=0 // pred_fallthru
    _
  // Predicated region
  $region14: #{qnn_forward.1} parent=0 // pred_check
    _
  $region15: #{qnn_forward.1} parent=0 // pred_check_branch
    %16 = sbr.rel (0) target = $region17
  $region16: #{qnn_forward.1} parent=0 // pred_region
    _
  $region17: #{qnn_forward.1} parent=0 // pred_fallthru
    _
  %v17 = vld [vmem:[%s0] sm:$0x3]
  %v18 = vld [vmem:[%s1] sm:$0xff]
  %v19 = vld [vmem:[%s1 + $0x8] sm:$0xff]
  %v20 = vld [vmem:[%s1 + $0x10] sm:$0xff]
  %v21 = vld [vmem:[%s1 + $0x18] sm:$0xff]
  %v22 = vld [vmem:[%s1 + $0x20] sm:$0xff]
  %v23 = vld [vmem:[%s1 + $0x28] sm:$0xff]
  %v24 = vld [vmem:[%s1 + $0x30] sm:$0xff]
  %v25 = vld [vmem:[%s1 + $0x38] sm:$0xff]
  %v26 = vld [vmem:[%s1 + $0x40] sm:$0xff]
  %v27 = vld [vmem:[%s1 + $0x48] sm:$0xff]
  %v28 = vld [vmem:[%s1 + $0x50] sm:$0xff]
  %v29 = vld [vmem:[%s1 + $0x58] sm:$0xff]
  %v30 = vld [vmem:[%s1 + $0x60] sm:$0xff]
  %v31 = vld [vmem:[%s1 + $0x68] sm:$0xff]
  %v32 = vld [vmem:[%s1 + $0x70] sm:$0xff]
  %v33 = vld [vmem:[%s1 + $0x78] sm:$0xff]
  %v34 = vld [vmem:[%s1 + $0x80] sm:$0xff]
  %v35 = vld [vmem:[%s1 + $0x88] sm:$0xff]
  %v36 = vld [vmem:[%s1 + $0x90] sm:$0xff]
  %v37 = vld [vmem:[%s1 + $0x98] sm:$0xff]
  %v38 = vld [vmem:[%s1 + $0xa0] sm:$0xff]
  %v39 = vld [vmem:[%s1 + $0xa8] sm:$0xff]
  %v40 = vld [vmem:[%s1 + $0xb0] sm:$0xff]
  %v41 = vld [vmem:[%s1 + $0xb8] sm:$0xff]
  %v42 = vld [vmem:[%s1 + $0xc0] sm:$0xff]
  %v43 = vld [vmem:[%s1 + $0xc8] sm:$0xff]
  %v44 = vld [vmem:[%s1 + $0xd0] sm:$0xff]
  %v45 = vld [vmem:[%s1 + $0xd8] sm:$0xff]
  %v46 = vld [vmem:[%s1 + $0xe0] sm:$0xff]
  %v47 = vld [vmem:[%s1 + $0xe8] sm:$0xff]
  %v48 = vld [vmem:[%s1 + $0xf0] sm:$0xff]
  %v49 = vld [vmem:[%s1 + $0xf8] sm:$0xff]
  %v50 = vld [vmem:[%s1 + $0x100] sm:$0xff]
  %v51 = vld [vmem:[%s1 + $0x108] sm:$0xff]
  %v52 = vld [vmem:[%s1 + $0x110] sm:$0xff]
  %v53 = vld [vmem:[%s1 + $0x118] sm:$0xff]
  %v54 = vld [vmem:[%s1 + $0x120] sm:$0xff]
  %v55 = vld [vmem:[%s1 + $0x128] sm:$0xff]
  %v56 = vld [vmem:[%s1 + $0x130] sm:$0xff]
  %v57 = vld [vmem:[%s1 + $0x138] sm:$0xff]
  %v58 = vld [vmem:[%s1 + $0x140] sm:$0xff]
  %v59 = vld [vmem:[%s1 + $0x148] sm:$0xff]
  %v60 = vld [vmem:[%s1 + $0x150] sm:$0xff]
  %v61 = vld [vmem:[%s1 + $0x158] sm:$0xff]
  %v62 = vld [vmem:[%s1 + $0x160] sm:$0xff]
  %v63 = vld [vmem:[%s1 + $0x168] sm:$0xff]
  %v64 = vld [vmem:[%s1 + $0x170] sm:$0xff]
  %v65 = vld [vmem:[%s1 + $0x178] sm:$0xff]
  %v66 = vld [vmem:[%s1 + $0x180] sm:$0xff]
  %v67 = vld [vmem:[%s1 + $0x188] sm:$0xff]
  %v68 = vld [vmem:[%s1 + $0x190] sm:$0xff]
  %v69 = vld [vmem:[%s1 + $0x198] sm:$0xff]
  %v70 = vld [vmem:[%s1 + $0x1a0] sm:$0xff]
  %v71 = vld [vmem:[%s1 + $0x1a8] sm:$0xff]
  %v72 = vld [vmem:[%s1 + $0x1b0] sm:$0xff]
  %v73 = vld [vmem:[%s1 + $0x1b8] sm:$0xff]
  %v74 = vld [vmem:[%s1 + $0x1c0] sm:$0xff]
  %v75 = vld [vmem:[%s1 + $0x1c8] sm:$0xff]
  %v76 = vld [vmem:[%s1 + $0x1d0] sm:$0xff]
  %v77 = vld [vmem:[%s1 + $0x1d8] sm:$0xff]
  %v78 = vld [vmem:[%s1 + $0x1e0] sm:$0xff]
  %v79 = vld [vmem:[%s1 + $0x1e8] sm:$0xff]
  %v80 = vld [vmem:[%s1 + $0x1f0] sm:$0xff]
  %v81 = vld [vmem:[%s1 + $0x1f8] sm:$0xff]
  %v83 = vlaneseq
  %v84 = vshrl.u32 %v83, 7
  %v85 = vsub.s32 0, %v84
  %v86 = vrot.slane %v17, %v85
  %v87 = vlaneseq
  %v88 = vshrl.u32 %v87, 7
  %v89 = vsub.s32 1, %v88
  %v90 = vrot.slane %v17, %v89
  %93 = vmatprep.subr.mxu0 %v19
  %94 = vmatpush1.msra.mxu0 %v18
  %95 = vmatprep.subr.mxu0 %v21
  %96 = vmatpush1.msra.mxu0 %v20
  %97 = vmatprep.subr.mxu0 %v23
  %98 = vmatpush1.msra.mxu0 %v22
  %99 = vmatprep.subr.mxu0 %v25
  %100 = vmatpush1.msra.mxu0 %v24
  %101 = vmatprep.subr.mxu0 %v27
  %102 = vmatpush1.msra.mxu0 %v26
  %103 = vmatprep.subr.mxu0 %v29
  %104 = vmatpush1.msra.mxu0 %v28
  %105 = vmatprep.subr.mxu0 %v31
  %106 = vmatpush1.msra.mxu0 %v30
  %107 = vmatprep.subr.mxu0 %v33
  %108 = vmatpush1.msra.mxu0 %v32
  %109 = vmatprep.subr.mxu0 %v35
  %110 = vmatpush1.msra.mxu0 %v34
  %111 = vmatprep.subr.mxu0 %v37
  %112 = vmatpush1.msra.mxu0 %v36
  %113 = vmatprep.subr.mxu0 %v39
  %114 = vmatpush1.msra.mxu0 %v38
  %115 = vmatprep.subr.mxu0 %v41
  %116 = vmatpush1.msra.mxu0 %v40
  %117 = vmatprep.subr.mxu0 %v43
  %118 = vmatpush1.msra.mxu0 %v42
  %119 = vmatprep.subr.mxu0 %v45
  %120 = vmatpush1.msra.mxu0 %v44
  %121 = vmatprep.subr.mxu0 %v47
  %122 = vmatpush1.msra.mxu0 %v46
  %123 = vmatprep.subr.mxu0 %v49
  %124 = vmatpush1.msra.mxu0 %v48
  %125 = vmatprep.subr.mxu0 %v51
  %126 = vmatpush1.msra.mxu0 %v50
  %127 = vmatprep.subr.mxu0 %v53
  %128 = vmatpush1.msra.mxu0 %v52
  %129 = vmatprep.subr.mxu0 %v55
  %130 = vmatpush1.msra.mxu0 %v54
  %131 = vmatprep.subr.mxu0 %v57
  %132 = vmatpush1.msra.mxu0 %v56
  %133 = vmatprep.subr.mxu0 %v59
  %134 = vmatpush1.msra.mxu0 %v58
  %135 = vmatprep.subr.mxu0 %v61
  %136 = vmatpush1.msra.mxu0 %v60
  %137 = vmatprep.subr.mxu0 %v63
  %138 = vmatpush1.msra.mxu0 %v62
  %139 = vmatprep.subr.mxu0 %v65
  %140 = vmatpush1.msra.mxu0 %v64
  %141 = vmatprep.subr.mxu0 %v67
  %142 = vmatpush1.msra.mxu0 %v66
  %143 = vmatprep.subr.mxu0 %v69
  %144 = vmatpush1.msra.mxu0 %v68
  %145 = vmatprep.subr.mxu0 %v71
  %146 = vmatpush1.msra.mxu0 %v70
  %147 = vmatprep.subr.mxu0 %v73
  %148 = vmatpush1.msra.mxu0 %v72
  %149 = vmatprep.subr.mxu0 %v75
  %150 = vmatpush1.msra.mxu0 %v74
  %151 = vmatprep.subr.mxu0 %v77
  %152 = vmatpush1.msra.mxu0 %v76
  %153 = vmatprep.subr.mxu0 %v79
  %154 = vmatpush1.msra.mxu0 %v78
  %155 = vmatprep.subr.mxu0 %v81
  %156 = vmatpush1.msra.mxu0 %v80
  %157 = vmatprep.mubr.f32.mxu0 %v90
  %158 = vmatmul.mubr.f32.gmra.mrb[0].mxu0 %v86
  %v159 = vpop.f32.mrb[0].mxu0
  %v160 = vadd.f32 0.0, %v159
  %v161 = vpop.f32.mrb[0].mxu0
  %v162 = vadd.f32 0.0, %v161
  %163 = vdwg.mxu0
  %v164 = vmul.f32 %v160, %v160
  %v165 = vmul.f32 %v162, %v162
  %v166 = vld [vmem:[%s2] sm:$0x3]
  %v168 = vlaneseq
  %v169 = vshrl.u32 %v168, 7
  %v170 = vsub.s32 0, %v169
  %v171 = vrot.slane %v166, %v170
  %v172 = vlaneseq
  %v173 = vshrl.u32 %v172, 7
  %v174 = vsub.s32 1, %v173
  %v175 = vrot.slane %v166, %v174
  %v178 = vmul.f32 %v164, %v171
  %v179 = vmul.f32 %v165, %v175
  %v180 = vld [vmem:[%s3] sm:$0xff]
  %v181 = vld [vmem:[%s3 + $0x8] sm:$0xff]
  %v182 = vld [vmem:[%s3 + $0x10] sm:$0xff]
  %v183 = vld [vmem:[%s3 + $0x18] sm:$0xff]
  %v184 = vld [vmem:[%s3 + $0x20] sm:$0xff]
  %v185 = vld [vmem:[%s3 + $0x28] sm:$0xff]
  %v186 = vld [vmem:[%s3 + $0x30] sm:$0xff]
  %v187 = vld [vmem:[%s3 + $0x38] sm:$0xff]
  %v188 = vld [vmem:[%s3 + $0x40] sm:$0xff]
  %v189 = vld [vmem:[%s3 + $0x48] sm:$0xff]
  %v190 = vld [vmem:[%s3 + $0x50] sm:$0xff]
  %v191 = vld [vmem:[%s3 + $0x58] sm:$0xff]
  %v192 = vld [vmem:[%s3 + $0x60] sm:$0xff]
  %v193 = vld [vmem:[%s3 + $0x68] sm:$0xff]
  %v194 = vld [vmem:[%s3 + $0x70] sm:$0xff]
  %v195 = vld [vmem:[%s3 + $0x78] sm:$0xff]
  %v196 = vld [vmem:[%s3 + $0x80] sm:$0xff]
  %v197 = vld [vmem:[%s3 + $0x88] sm:$0xff]
  %v198 = vld [vmem:[%s3 + $0x90] sm:$0xff]
  %v199 = vld [vmem:[%s3 + $0x98] sm:$0xff]
  %v200 = vld [vmem:[%s3 + $0xa0] sm:$0xff]
  %v201 = vld [vmem:[%s3 + $0xa8] sm:$0xff]
  %v202 = vld [vmem:[%s3 + $0xb0] sm:$0xff]
  %v203 = vld [vmem:[%s3 + $0xb8] sm:$0xff]
  %v204 = vld [vmem:[%s3 + $0xc0] sm:$0xff]
  %v205 = vld [vmem:[%s3 + $0xc8] sm:$0xff]
  %v206 = vld [vmem:[%s3 + $0xd0] sm:$0xff]
  %v207 = vld [vmem:[%s3 + $0xd8] sm:$0xff]
  %v208 = vld [vmem:[%s3 + $0xe0] sm:$0xff]
  %v209 = vld [vmem:[%s3 + $0xe8] sm:$0xff]
  %v210 = vld [vmem:[%s3 + $0xf0] sm:$0xff]
  %v211 = vld [vmem:[%s3 + $0xf8] sm:$0xff]
  %212 = vmatprep.subr.mxu0 0.0
  %213 = vmatpush1.msra.mxu0 %v180
  %214 = vmatprep.subr.mxu0 0.0
  %215 = vmatpush1.msra.mxu0 %v181
  %216 = vmatprep.subr.mxu0 0.0
  %217 = vmatpush1.msra.mxu0 %v182
  %218 = vmatprep.subr.mxu0 0.0
  %219 = vmatpush1.msra.mxu0 %v183
  %220 = vmatprep.subr.mxu0 0.0
  %221 = vmatpush1.msra.mxu0 %v184
  %222 = vmatprep.subr.mxu0 0.0
  %223 = vmatpush1.msra.mxu0 %v185
  %224 = vmatprep.subr.mxu0 0.0
  %225 = vmatpush1.msra.mxu0 %v186
  %226 = vmatprep.subr.mxu0 0.0
  %227 = vmatpush1.msra.mxu0 %v187
  %228 = vmatprep.subr.mxu0 0.0
  %229 = vmatpush1.msra.mxu0 %v188
  %230 = vmatprep.subr.mxu0 0.0
  %231 = vmatpush1.msra.mxu0 %v189
  %232 = vmatprep.subr.mxu0 0.0
  %233 = vmatpush1.msra.mxu0 %v190
  %234 = vmatprep.subr.mxu0 0.0
  %235 = vmatpush1.msra.mxu0 %v191
  %236 = vmatprep.subr.mxu0 0.0
  %237 = vmatpush1.msra.mxu0 %v192
  %238 = vmatprep.subr.mxu0 0.0
  %239 = vmatpush1.msra.mxu0 %v193
  %240 = vmatprep.subr.mxu0 0.0
  %241 = vmatpush1.msra.mxu0 %v194
  %242 = vmatprep.subr.mxu0 0.0
  %243 = vmatpush1.msra.mxu0 %v195
  %244 = vmatprep.subr.mxu0 0.0
  %245 = vmatpush1.msra.mxu0 %v196
  %246 = vmatprep.subr.mxu0 0.0
  %247 = vmatpush1.msra.mxu0 %v197
  %248 = vmatprep.subr.mxu0 0.0
  %249 = vmatpush1.msra.mxu0 %v198
  %250 = vmatprep.subr.mxu0 0.0
  %251 = vmatpush1.msra.mxu0 %v199
  %252 = vmatprep.subr.mxu0 0.0
  %253 = vmatpush1.msra.mxu0 %v200
  %254 = vmatprep.subr.mxu0 0.0
  %255 = vmatpush1.msra.mxu0 %v201
  %256 = vmatprep.subr.mxu0 0.0
  %257 = vmatpush1.msra.mxu0 %v202
  %258 = vmatprep.subr.mxu0 0.0
  %259 = vmatpush1.msra.mxu0 %v203
  %260 = vmatprep.subr.mxu0 0.0
  %261 = vmatpush1.msra.mxu0 %v204
  %262 = vmatprep.subr.mxu0 0.0
  %263 = vmatpush1.msra.mxu0 %v205
  %264 = vmatprep.subr.mxu0 0.0
  %265 = vmatpush1.msra.mxu0 %v206
  %266 = vmatprep.subr.mxu0 0.0
  %267 = vmatpush1.msra.mxu0 %v207
  %268 = vmatprep.subr.mxu0 0.0
  %269 = vmatpush1.msra.mxu0 %v208
  %270 = vmatprep.subr.mxu0 0.0
  %271 = vmatpush1.msra.mxu0 %v209
  %272 = vmatprep.subr.mxu0 0.0
  %273 = vmatpush1.msra.mxu0 %v210
  %274 = vmatprep.subr.mxu0 0.0
  %275 = vmatpush1.msra.mxu0 %v211
  %276 = vmatprep.mubr.f32.mxu0 %v179
  %277 = vmatmul.mubr.f32.gmra.mrb[0].mxu0 %v178
  %v278 = vpop.f32.mrb[0].mxu0
  %v279 = vadd.f32 0.0, %v278
  %v280 = vpop.f32.mrb[0].mxu0
  %281 = vdwg.mxu0
  %282 = vst [vmem:[%s4] sm:$0x1] %v279
  // Predicated region
  $region18: #{qnn_forward.1} parent=0 // pred_check
    _
  $region19: #{qnn_forward.1} parent=0 // pred_check_branch
    %284 = sbr.rel (0) target = $region21
  $region20: #{qnn_forward.1} parent=0 // pred_region
    _
  $region21: #{qnn_forward.1} parent=0 // pred_fallthru
    _
  // Predicated region
  $region22: #{qnn_forward.1} parent=0 // pred_check
    _
  $region23: #{qnn_forward.1} parent=0 // pred_check_branch
    %286 = sbr.rel (0) target = $region25
  $region24: #{qnn_forward.1} parent=0 // pred_region
    _
  $region25: #{qnn_forward.1} parent=0 // pred_fallthru
    _

</llo_original>
